<compile_context>
chip_gen: v7x
topology: tpu7x:2x2x1
jax: 0.10.0
libtpu: 0.0.40
codegen_flags: <defaults>
</compile_context>

<pallas_src>
import functools

import jax
import jax.numpy as jnp
import numpy as np
from jax.experimental import pallas as pl
from jax.experimental.pallas import tpu as pltpu


_VMEM_LIMIT = 32 * 1024 * 1024   # explicit scoped-VMEM cap, safe on v5e/v6e/v7x
_LANE_TILE_MAX = 1024            # time-tile target (lane axis, multiple of 128)
_BLOCK_BYTES_TARGET = 1 << 20    # ~1 MiB x-block -> ~4-5 MiB with double buffering


def _pick_tile(n, max_tile, quantum):
    """Largest divisor of n that is <= max_tile and a multiple of quantum.
    Falls back to the full dim (always a legal Pallas block) if none exists."""
    if n <= max_tile:
        return n
    start = max_tile - (max_tile % quantum)
    for d in range(start, 0, -quantum):
        if n % d == 0:
            return d
    return n


# ---------------------------------------------------------------- kernels ----

def _colmean_kernel(x_ref, o_ref, *, inv_c):
    # x_ref: (1, CB, TT); o_ref: (1, 1, TT) f32, resident across the C axis.
    @pl.when(pl.program_id(2) == 0)
    def _():
        o_ref[...] = jnp.zeros_like(o_ref)

    o_ref[...] += jnp.sum(x_ref[...].astype(jnp.float32), axis=1, keepdims=True) * inv_c


def _gate_kernel(y_ref, w1_ref, w2_ref, o_ref):
    # y_ref: (B, Tc); w1_ref: (Tc, H); w2_ref: (H, Tc); o_ref: (B, Tc) f32.
    y = y_ref[...].astype(jnp.float32)
    h = jnp.maximum(jnp.dot(y, w1_ref[...], preferred_element_type=jnp.float32), 0.0)
    o_ref[...] = jax.nn.sigmoid(jnp.dot(h, w2_ref[...], preferred_element_type=jnp.float32))


def _scale_kernel(x_ref, g_ref, o_ref):
    # x_ref: (1, CB, TT); g_ref: (1, 1, TT) f32; o_ref: (1, CB, TT).
    o_ref[...] = (x_ref[...].astype(jnp.float32) * g_ref[...]).astype(o_ref.dtype)


# ---------------------------------------------------------------- wrappers ----

def _column_mean(x, lane_tile_max, block_bytes_target):
    b, c, t = x.shape
    tt = _pick_tile(t, lane_tile_max, 128)
    row_budget = max(8, block_bytes_target // (tt * x.dtype.itemsize))
    cb = _pick_tile(c, row_budget, 8)
    grid = (b, t // tt, c // cb)
    return pl.pallas_call(
        functools.partial(_colmean_kernel, inv_c=1.0 / c),
        out_shape=jax.ShapeDtypeStruct((b, 1, t), jnp.float32),
        grid=grid,
        in_specs=[pl.BlockSpec((1, cb, tt), lambda bi, ti, ci: (bi, ci, ti))],
        out_specs=pl.BlockSpec((1, 1, tt), lambda bi, ti, ci: (bi, 0, ti)),
        compiler_params=pltpu.CompilerParams(
            dimension_semantics=("parallel", "parallel", "arbitrary"),
            vmem_limit_bytes=_VMEM_LIMIT),
    )(x)


def _gate(y_ds, w1t, w2t):
    b, tc = y_ds.shape
    h = w1t.shape[1]
    return pl.pallas_call(
        _gate_kernel,
        out_shape=jax.ShapeDtypeStruct((b, tc), jnp.float32),
        grid=(1,),
        in_specs=[
            pl.BlockSpec((b, tc), lambda i: (0, 0)),
            pl.BlockSpec((tc, h), lambda i: (0, 0)),
            pl.BlockSpec((h, tc), lambda i: (0, 0)),
        ],
        out_specs=pl.BlockSpec((b, tc), lambda i: (0, 0)),
        compiler_params=pltpu.CompilerParams(dimension_semantics=("arbitrary",)),
    )(y_ds, w1t, w2t)


def _scale(x, gate_up, lane_tile_max, block_bytes_target):
    b, c, t = x.shape
    tt = _pick_tile(t, lane_tile_max, 128)
    row_budget = max(8, block_bytes_target // (tt * x.dtype.itemsize))
    cb = _pick_tile(c, row_budget, 8)
    grid = (b, c // cb, t // tt)
    return pl.pallas_call(
        _scale_kernel,
        out_shape=jax.ShapeDtypeStruct((b, c, t), x.dtype),
        grid=grid,
        in_specs=[
            pl.BlockSpec((1, cb, tt), lambda bi, ci, ti: (bi, ci, ti)),
            pl.BlockSpec((1, 1, tt), lambda bi, ci, ti: (bi, 0, ti)),
        ],
        out_specs=pl.BlockSpec((1, cb, tt), lambda bi, ci, ti: (bi, ci, ti)),
        compiler_params=pltpu.CompilerParams(
            dimension_semantics=("parallel", "parallel", "parallel"),
            vmem_limit_bytes=_VMEM_LIMIT),
    )(x, gate_up)


def se_block_pallas(x, w1, w2, channel, *,
                    lane_tile_max=_LANE_TILE_MAX,
                    block_bytes_target=_BLOCK_BYTES_TARGET):
    """x: (B, C, T). w1: (channel//ratio, channel), w2: (channel, channel//ratio).
    Output dtype matches x (bf16 x halves the HBM traffic of the scale pass;
    all accumulation / FC math stays in f32)."""
    x = jnp.asarray(x)
    b, c, t = x.shape
    T = channel
    assert t >= T, "se_block: only t >= channel is supported (t < channel is ill-formed in the PyTorch module)"

    w1t = jnp.asarray(w1, jnp.float32).T     # (T, H)
    w2t = jnp.asarray(w2, jnp.float32).T     # (H, T)

    # 1) channel mean of x (mean commutes with the nearest-neighbour gather).
    colmean = _column_mean(x, lane_tile_max, block_bytes_target)[:, 0, :]   # (B, t) f32

    # 2) nearest downsample (static indices, tiny vector) -- skipped when t == T.
    if t > T:
        src_down = (np.arange(T) * t) // T          # PyTorch 'nearest': floor(i * in / out)
        y_ds = colmean[:, src_down]                 # (B, T)
    else:
        y_ds = colmean                              # (B, T), t == T

    # 3) squeeze-excite FC gate.
    gate = _gate(y_ds, w1t, w2t)                    # (B, T) f32

    # 4) nearest upsample (static indices) -- skipped when t == T.
    if t > T:
        src_up = (np.arange(t) * T) // t
        gate_up = gate[:, src_up]                   # (B, t)
    else:
        gate_up = gate

    # 5) lane-dense broadcast scale.
    return _scale(x, gate_up.reshape(b, 1, t), lane_tile_max, block_bytes_target)


def se_block_ref(x, w1, w2, channel):
    """Pure-JAX reference reproducing the PyTorch forward exactly."""
    b, c, t = x.shape
    T = channel
    if t > T:
        idx = (np.arange(T) * t) // T
        y = jnp.mean(x[:, :, idx], axis=1)          # (b, T)
    else:
        y = jnp.mean(x, axis=1)                     # (b, t) ; requires t == channel
    y = jnp.maximum(y @ w1.T, 0.0)
    y = jax.nn.sigmoid(y @ w2.T)                    # (b, T)
    if t > T:
        up = (np.arange(t) * T) // t
        y = y[:, up]                                # (b, t)
    return x * y[:, None, :]


if __name__ == "__main__":
    channel, ratio = 16, 8
    hidden = channel // ratio

    key = jax.random.PRNGKey(0)
    kx1, kx2, kx3, kw1, kw2 = jax.random.split(key, 5)

    # Deterministic "Linear" weights (no bias), shapes as in nn.Linear(out, in).
    w1 = jax.random.normal(kw1, (hidden, channel), jnp.float32) * 0.5   # fc[0].weight
    w2 = jax.random.normal(kw2, (channel, hidden), jnp.float32) * 0.5   # fc[2].weight

    # Case 1: t > channel -> interpolation path
    x1 = jax.random.normal(kx1, (2, 4, 32), jnp.float32)
    out1 = jax.block_until_ready(se_block_pallas(x1, w1, w2, channel))
    ref1 = se_block_ref(x1, w1, w2, channel)
    np.testing.assert_allclose(np.asarray(out1), np.asarray(ref1), rtol=1e-5, atol=1e-5)

    # Case 2: t == channel -> plain path (no interpolation, no gathers at all)
    x2 = jax.random.normal(kx2, (2, 4, 16), jnp.float32)
    out2 = jax.block_until_ready(se_block_pallas(x2, w1, w2, channel))
    ref2 = se_block_ref(x2, w1, w2, channel)
    np.testing.assert_allclose(np.asarray(out2), np.asarray(ref2), rtol=1e-5, atol=1e-5)

    # Case 3: force multi-tile C-reduction and T-tiling paths (small tile caps)
    x3 = jax.random.normal(kx3, (2, 32, 256), jnp.float32)
    out3 = jax.block_until_ready(
        se_block_pallas(x3, w1, w2, channel, lane_tile_max=128, block_bytes_target=4096))
    ref3 = se_block_ref(x3, w1, w2, channel)
    np.testing.assert_allclose(np.asarray(out3), np.asarray(ref3), rtol=1e-5, atol=1e-5)

    print("KERNEL_OK")
</pallas_src>

<mosaic_0001>
module attributes {stable_mosaic.version = 11 : i64} {
  func.func @_colmean_kernel(%arg0: i32, %arg1: i32, %arg2: i32, %arg3: memref<1x4x32xf32, #tpu.memory_space<vmem>>, %arg4: memref<1x1x32xf32, #tpu.memory_space<vmem>>) attributes {dimension_semantics = [#tpu.dimension_semantics<parallel>, #tpu.dimension_semantics<parallel>, #tpu.dimension_semantics<arbitrary>], iteration_bounds = array<i64: 2, 1, 1>, scalar_prefetch = 0 : i64, scratch_operands = 0 : i64, tpu.core_type = #tpu.core_type<tc>, window_params = [{transform_indices = @transform_0, window_bounds = array<i64: 1, 4, 32>}, {transform_indices = @transform_1, window_bounds = array<i64: 1, 1, 32>}]} {
    %c0_i32 = arith.constant 0 : i32
    %0 = arith.cmpi eq, %arg2, %c0_i32 : i32
    %1 = arith.extui %0 : i1 to i32
    %c0_i32_0 = arith.constant 0 : i32
    %2 = arith.cmpi ne, %1, %c0_i32_0 : i32
    scf.if %2 {
      %cst_10 = arith.constant 0.000000e+00 : f32
      %11 = vector.broadcast %cst_10 : f32 to vector<1x1x32xf32>
      %c0_11 = arith.constant 0 : index
      %c0_12 = arith.constant 0 : index
      %c0_13 = arith.constant 0 : index
      %12 = vector.load %arg4[%c0_11, %c0_12, %c0_13] : memref<1x1x32xf32, #tpu.memory_space<vmem>>, vector<1x1x32xf32>
      tpu.vector_store %arg4[%c0_11, %c0_12, %c0_13], %11 {strides = array<i32>} : memref<1x1x32xf32, #tpu.memory_space<vmem>>, vector<1x1x32xf32>,
    } else {
    }
    %c0 = arith.constant 0 : index
    %c0_1 = arith.constant 0 : index
    %c0_2 = arith.constant 0 : index
    %3 = vector.load %arg4[%c0, %c0_1, %c0_2] : memref<1x1x32xf32, #tpu.memory_space<vmem>>, vector<1x1x32xf32>
    %c0_3 = arith.constant 0 : index
    %c0_4 = arith.constant 0 : index
    %c0_5 = arith.constant 0 : index
    %4 = vector.load %arg3[%c0_3, %c0_4, %c0_5] : memref<1x4x32xf32, #tpu.memory_space<vmem>>, vector<1x4x32xf32>
    %cst = arith.constant dense<0.000000e+00> : vector<1x32xf32>
    %5 = vector.multi_reduction <add>, %4, %cst [1] : vector<1x4x32xf32> to vector<1x32xf32>
    %6 = vector.shape_cast %5 : vector<1x32xf32> to vector<1x1x32xf32>
    %cst_6 = arith.constant 2.500000e-01 : f32
    %7 = vector.broadcast %cst_6 : f32 to vector<1x1x32xf32>
    %8 = arith.mulf %6, %7 : vector<1x1x32xf32>
    %9 = arith.addf %3, %8 : vector<1x1x32xf32>
    %c0_7 = arith.constant 0 : index
    %c0_8 = arith.constant 0 : index
    %c0_9 = arith.constant 0 : index
    %10 = vector.load %arg4[%c0_7, %c0_8, %c0_9] : memref<1x1x32xf32, #tpu.memory_space<vmem>>, vector<1x1x32xf32>
    tpu.vector_store %arg4[%c0_7, %c0_8, %c0_9], %9 {strides = array<i32>} : memref<1x1x32xf32, #tpu.memory_space<vmem>>, vector<1x1x32xf32>,
    return
  }
  func.func @transform_0(%arg0: i32, %arg1: i32, %arg2: i32) -> (i32, i32, i32) {
    %c0_i32 = arith.constant 0 : i32
    return %arg0, %arg2, %arg1 : i32, i32, i32
  }
  func.func @transform_1(%arg0: i32, %arg1: i32, %arg2: i32) -> (i32, i32, i32) {
    %c0_i32 = arith.constant 0 : i32
    %c0_i32_0 = arith.constant 0 : i32
    return %arg0, %c0_i32, %arg1 : i32, i32, i32
  }
}

</mosaic_0001>

<llo_original>
// kernel: tpu_custom_call.1
$region0: #{tpu_custom_call.1}
  #allocation0 [shape = 'u32[]', space=smem, size = 0x4, offset = 0x4, fixed_abs, tag = 'smem constant byte address 0x4 - core index']
  #allocation1 [shape = 'u32[144,128]{1,0:T(1,128)}', space=vmem, size = 0x12000, scoped, tag = 'internal scratch']
  %s0 = inlined_call_operand.hbm [shape: f32[2,4,32], index: 0, kind: input, shape index: {}]
  %s1 = inlined_call_operand.hbm [shape: f32[2,1,32], index: 1, kind: output, shape index: {}]
  %s2 = sld [smem:[#allocation0]]
  $region45: #{tpu_custom_call.1} parent=0
    _
  %s4 = ssub.s32 1, %s2
  %s5 = scalar_select 0, %s4, %s2
  $region1: #{tpu_custom_call.1} parent=0
    #allocation2 [shape = 'u8[4096]{0}', space=vmem, size = 0x1000, scoped, tag = 'input window, operand 0']
    #allocation3 [shape = 's32[2]{0}', space=sflag, size = 0x8, scoped, tag = 'scoped memory for tpu_custom_call.1']
    #allocation4 [shape = 's32[2]{0}', space=sflag, size = 0x8, scoped, tag = 'scoped memory for tpu_custom_call.1']
    #allocation5 [shape = 'u8[1024]{0}', space=vmem, size = 0x400, scoped, tag = 'output window, operand 0']
    %6 = vsyncpa [#allocation3], 0
    %s7 = scalar_lea.sflag [#allocation3], 1
    %8 = vsyncpa %s7, 0
    %9 = vsyncpa [#allocation4], 0
    %s10 = scalar_lea.sflag [#allocation4], 1
    %11 = vsyncpa %s10, 0
    loop: start=0, step=1, limit=4
    $region2: #{tpu_custom_call.1} parent=1 // loop_pre_header
      _
    $region3: #{tpu_custom_call.1} parent=1 // loop_header
      %s13 = sphi 0, %s17
      %p14 = scmp.ge.s32.totalorder %s13, 4
      %s20 = sphi 0, %s39
      %s21 = sphi 0, %s35
      %s22 = sphi 0, %s31
      %s23 = sphi 0, %s20
      %s24 = sphi 0, %s21
      %s25 = sphi 0, %s22
      %s26 = sphi 0, %s23
      %s27 = sphi 0, %s24
      %s28 = sphi 0, %s25
      %s46 = sphi 0, %s48
      %s49 = sphi 0, %s46
      %s50 = sphi 0, %s49
      %s66 = sphi 0, %s50
      %s74 = sphi 0, %s76
      %s77 = sphi 0, %s74
      %s78 = sphi 0, %s77
      %s94 = sphi 0, %s78
    $region4: #{tpu_custom_call.1} parent=1 // loop_header_branch
      %16 = sbr.rel (%p14) target = $region8
    $region5: #{tpu_custom_call.1} parent=1 // loop_body
      %s18 = ssub.s32 %s13, 1
      %s19 = ssub.s32 %s13, 2
      %s29 = sadd.s32 1, %s22
      %p30 = scmp.ge.s32.totalorder %s29, 1
      %s31 = scalar_select %p30, 0, %s29
      %s32 = sadd.s32 1, %s21
      %s33 = scalar_select %p30, %s32, %s21
      %p34 = scmp.ge.s32.totalorder %s33, 1
      %s35 = scalar_select %p34, 0, %s33
      %s36 = sadd.s32 1, %s20
      %s37 = scalar_select %p34, %s36, %s20
      %p38 = scmp.ge.s32.totalorder %s37, 2
      %s39 = scalar_select %p38, 0, %s37
      %s40 = ssub.s32 %s20, %s39
      %s41 = ssub.s32 %s22, %s31
      %s42 = sor.u32 %s40, %s41
      %s43 = ssub.s32 %s21, %s35
      %s44 = sor.u32 %s42, %s43
      %p45 = scmp.eq.s32.totalorder %s44, 0
      %s47 = sadd.s32 %s46, 1
      %s48 = scalar_select %p45, %s46, %s47
      %p51 = pneg %p45
      %p52 = scmp.eq.s32.totalorder %s13, 1
      %p53 = por %p51, %p52
      %p54 = scmp.ne.s32.totalorder %s46, %s49
      %p55 = scmp.eq.s32.totalorder %s13, 0
      %p56 = por %p54, %p55
      %p57 = scmp.ne.s32.totalorder %s46, %s49
      %p58 = scmp.eq.s32.totalorder %s18, 1
      %p59 = por %p57, %p58
      %p60 = scmp.ne.s32.totalorder %s49, %s50
      %p61 = scmp.eq.s32.totalorder %s18, 0
      %p62 = por %p60, %p61
      %p63 = scmp.ne.s32.totalorder %s49, %s50
      %p64 = scmp.eq.s32.totalorder %s19, 1
      %p65 = por %p63, %p64
      %p67 = scmp.ne.s32.totalorder %s50, %s66
      %p68 = scmp.eq.s32.totalorder %s19, 0
      %p69 = por %p67, %p68
      %s70 = ssub.s32 %s20, %s39
      %s71 = ssub.s32 %s21, %s35
      %s72 = sor.u32 %s70, %s71
      %p73 = scmp.eq.s32.totalorder %s72, 0
      %s75 = sadd.s32 %s74, 1
      %s76 = scalar_select %p73, %s74, %s75
      %p79 = pneg %p73
      %p80 = scmp.eq.s32.totalorder %s13, 1
      %p81 = por %p79, %p80
      %p82 = scmp.ne.s32.totalorder %s74, %s77
      %p83 = scmp.eq.s32.totalorder %s13, 0
      %p84 = por %p82, %p83
      %p85 = scmp.ne.s32.totalorder %s74, %s77
      %p86 = scmp.eq.s32.totalorder %s18, 1
      %p87 = por %p85, %p86
      %p88 = scmp.ne.s32.totalorder %s77, %s78
      %p89 = scmp.eq.s32.totalorder %s18, 0
      %p90 = por %p88, %p89
      %p91 = scmp.ne.s32.totalorder %s77, %s78
      %p92 = scmp.eq.s32.totalorder %s19, 1
      %p93 = por %p91, %p92
      %p95 = scmp.ne.s32.totalorder %s78, %s94
      %p96 = scmp.eq.s32.totalorder %s19, 0
      %p97 = por %p95, %p96
      %p98 = scmp.le.s32.totalorder 1, %s13
      %p99 = scmp.lt.s32.totalorder %s13, 3
      %p100 = pnand %p98, %p99
      %p101 = pneg %p100
      // Predicated region
      $region9: #{tpu_custom_call.1} parent=5 // pred_check
        _
      $region10: #{tpu_custom_call.1} parent=5 // pred_check_branch
        %103 = sbr.rel (%p100) target = $region12
      $region11: #{tpu_custom_call.1} parent=5 // pred_region
        %s104 = ssub.s32 %s13, 1
      $region12: #{tpu_custom_call.1} parent=5 // pred_fallthru
        _
      %p105 = scmp.lt.s32.totalorder %s13, 2
      // Predicated region
      $region13: #{tpu_custom_call.1} parent=5 // pred_check
        %p106 = pneg %p105
      $region14: #{tpu_custom_call.1} parent=5 // pred_check_branch
        %108 = sbr.rel (%p106) target = $region16
      $region15: #{tpu_custom_call.1} parent=5 // pred_region
        // Predicated region
        $region17: #{tpu_custom_call.1} parent=15 // pred_check
          %p109 = pneg %p56
        $region18: #{tpu_custom_call.1} parent=15 // pred_check_branch
          %111 = sbr.rel (%p109) target = $region20
        $region19: #{tpu_custom_call.1} parent=15 // pred_region
          %s112 = sand.u32 %s46, 1
          %s113 = scalar_lea.sflag [#allocation3], %s112
          %s114 = sand.u32 %s46, 1
          %s115 = smul.addr %s114, 4
          %s116 = scalar_lea.vmem [#allocation2], %s115
          %s118 = ssub.s32 64, 64
          %119 = vsyncadd %s113, %s118
          %s120 = sadd.s32 %s21, %s22
          %s121 = sadd.s32 %s120, %s20
          %s122 = smul.addr %s121, 64
          %s123 = scalar_lea.hbm %s0, %s122
          %s125 = sshll.u32 %s116, 4
          %s126 = int_to_ptr.vmem [resolvable:$true] %s125
          %128 = dma.hbm_to_vmem [thread:$0]  %s123, 64, %s126, %s113
        $region20: #{tpu_custom_call.1} parent=15 // pred_fallthru
          _
      $region16: #{tpu_custom_call.1} parent=5 // pred_fallthru
        _
      %p129 = scmp.le.s32.totalorder 1, %s13
      %p130 = scmp.lt.s32.totalorder %s13, 3
      %p131 = pnand %p129, %p130
      %p132 = pneg %p131
      // Predicated region
      $region21: #{tpu_custom_call.1} parent=5 // pred_check
        _
      $region22: #{tpu_custom_call.1} parent=5 // pred_check_branch
        %134 = sbr.rel (%p131) target = $region24
      $region23: #{tpu_custom_call.1} parent=5 // pred_region
        %s135 = ssub.s32 %s13, 1
        %s136 = sand.u32 %s49, 1
        %s137 = scalar_lea.sflag [#allocation3], %s136
        %s138 = sand.u32 %s49, 1
        %s139 = smul.addr %s138, 4
        %s140 = scalar_lea.vmem [#allocation2], %s139
        // Predicated region
        $region25: #{tpu_custom_call.1} parent=23 // pred_check
          %p141 = pneg %p62
        $region26: #{tpu_custom_call.1} parent=23 // pred_check_branch
          %143 = sbr.rel (%p141) target = $region28
        $region27: #{tpu_custom_call.1} parent=23 // pred_region
          %144 = dma.done %s137, 64
        $region28: #{tpu_custom_call.1} parent=23 // pred_fallthru
          _
        %s145 = sand.u32 %s49, 1
        %s146 = scalar_lea.sflag [#allocation3], %s145
        %s147 = sand.u32 %s49, 1
        %s148 = smul.addr %s147, 4
        %s149 = scalar_lea.vmem [#allocation2], %s148
        %p150 = pneg %p62
        %p151 = pneg %p59
        %p152 = pneg %p90
        %p153 = pneg %p87
        %s154 = sand.u32 %s77, 1
        %s155 = scalar_lea.sflag [#allocation4], %s154
        %s156 = sand.u32 %s77, 1
        %s157 = scalar_lea.vmem [#allocation5], %s156
        %p158 = scmp.eq.s32.totalorder %s25, 0
        // Predicated region
        $region29: #{tpu_custom_call.1} parent=23 // pred_check
          %p159 = pneg %p158
        $region30: #{tpu_custom_call.1} parent=23 // pred_check_branch
          %161 = sbr.rel (%p159) target = $region32
        $region31: #{tpu_custom_call.1} parent=23 // pred_region
          %vm162 = vcmask 253952
          %163 = vst.msk [vmem:[%s157] sm:$0x1] %vm162, 0.0
        $region32: #{tpu_custom_call.1} parent=23 // pred_fallthru
          _
        %v164 = vld [vmem:[%s157] sm:$0x1]
        %v165 = vld [vmem:[%s140] sm:$0xf]
        %vm166 = vcmask 257024
        %v167 = vsel %vm166, %v165, 0.0
        %v168 = vrot.slane %v167, 4
        %v169 = vadd.f32 %v167, %v168
        %v170 = vrot.slane %v169, 2
        %v171 = vadd.f32 %v169, %v170
        %v172 = vrot.slane %v171, 1
        %v173 = vadd.f32 %v171, %v172
        %v174 = vmul.f32 %v173, 0.25
        %v175 = vadd.f32 %v164, %v174
        %vm176 = vcmask 253952
        %177 = vst.msk [vmem:[%s157] sm:$0x1] %vm176, %v175
        %s178 = sand.u32 %s77, 1
        %s179 = scalar_lea.sflag [#allocation4], %s178
        %s180 = sand.u32 %s77, 1
        %s181 = scalar_lea.vmem [#allocation5], %s180
        // Predicated region
        $region33: #{tpu_custom_call.1} parent=23 // pred_check
          %p182 = pneg %p87
        $region34: #{tpu_custom_call.1} parent=23 // pred_check_branch
          %184 = sbr.rel (%p182) target = $region36
        $region35: #{tpu_custom_call.1} parent=23 // pred_region
          %s186 = ssub.s32 16, 16
          %187 = vsyncadd %s179, %s186
          %s188 = sadd.s32 %s24, %s23
          %s189 = smul.addr %s188, 16
          %s190 = scalar_lea.hbm %s1, %s189
          %s192 = sshll.u32 %s181, 4
          %s193 = int_to_ptr.vmem [resolvable:$true] %s192
          %195 = dma.vmem_to_hbm [thread:$0]  %s193, 16, %s190, %s179
        $region36: #{tpu_custom_call.1} parent=23 // pred_fallthru
          _
      $region24: #{tpu_custom_call.1} parent=5 // pred_fallthru
        _
      %p196 = scmp.le.s32.totalorder 2, %s13
      // Predicated region
      $region37: #{tpu_custom_call.1} parent=5 // pred_check
        %p197 = pneg %p196
      $region38: #{tpu_custom_call.1} parent=5 // pred_check_branch
        %199 = sbr.rel (%p197) target = $region40
      $region39: #{tpu_custom_call.1} parent=5 // pred_region
        %s200 = ssub.s32 %s13, 2
        // Predicated region
        $region41: #{tpu_custom_call.1} parent=39 // pred_check
          %p201 = pneg %p93
        $region42: #{tpu_custom_call.1} parent=39 // pred_check_branch
          %203 = sbr.rel (%p201) target = $region44
        $region43: #{tpu_custom_call.1} parent=39 // pred_region
          %s204 = sand.u32 %s78, 1
          %s205 = scalar_lea.sflag [#allocation4], %s204
          %s206 = sand.u32 %s78, 1
          %s207 = scalar_lea.vmem [#allocation5], %s206
          %208 = dma.done %s205, 16
        $region44: #{tpu_custom_call.1} parent=39 // pred_fallthru
          _
      $region40: #{tpu_custom_call.1} parent=5 // pred_fallthru
        _
    $region6: #{tpu_custom_call.1} parent=1 // loop_footer
      %s17 = sadd.s32 1, %s13
    $region7: #{tpu_custom_call.1} parent=1 // loop_footer_branch
      %12 = sbr.rel target = $region3
    $region8: #{tpu_custom_call.1} parent=1 // loop_exit
      _
    %209 = vsyncpa [#allocation3], 1
    %s210 = scalar_lea.sflag [#allocation3], 1
    %211 = vsyncpa %s210, 1
    %212 = vsyncpa [#allocation4], 1
    %s213 = scalar_lea.sflag [#allocation4], 1
    %214 = vsyncpa %s213, 1

</llo_original>
